<compile_context>
chip_gen: v6e
topology: v6e:2x2x1
jax: 0.10.0
libtpu: 0.0.40
codegen_flags: <defaults>
</compile_context>

<pallas_src>
import math

import jax
import jax.numpy as jnp
from jax.experimental import pallas as pl
from jax.experimental.pallas import tpu as pltpu

V_THRESHOLD = 1.0
V_RESET = 0.0
INIT_TAU = 2.0

_VMEM_BUDGET = 12 * 1024 * 1024   # per-grid-step working-set target (v5e-safe)
_VMEM_LIMIT = 32 * 1024 * 1024    # explicit scoped-VMEM limit (valid on v5e/v6e/v7x)


def _round_up(x, m):
    return ((x + m - 1) // m) * m


def _choose_layout(total):
    """Lane-dense column width: prefer wide slabs for long contiguous stores."""
    for cols in (512, 256, 128):
        if total % cols == 0:
            return cols, 0
    # TODO(synk): ragged flatten size -> pad to a lane multiple (extra wrapper copy).
    cols = 128
    return cols, _round_up(total, cols) - total


def _choose_tiles(T, R, cols, stream_bytes_per_elem):
    """Pick (TT, TR).

    TT: enough time sub-steps per grid step to amortize the ~0.35 us fixed
        per-step cost even when R is small.
    TR: largest 32-row multiple keeping the double-buffered streams + scratch
        under the v5e-safe VMEM budget; when the whole R fits and R >= 64 we
        still split into two tiles so the "parallel" axis feeds both v7x cores.
    """
    tt = min(T, 8)
    while tt < min(T, 32) and tt * R * cols * stream_bytes_per_elem < (2 << 20):
        tt = min(tt * 2, T)

    per_row = tt * cols * stream_bytes_per_elem + 4 * cols  # streams + f32 state
    tr = max(1, _VMEM_BUDGET // per_row)
    if tr >= R:
        if R >= 64:
            tr = _round_up((R + 1) // 2, 32)   # >= 2 row tiles for v7x megacore
        else:
            tr = R                             # full-extent block (always legal)
    else:
        tr = max(32, (tr // 32) * 32)          # 32-row multiple: legal for int8 too
        tr = min(tr, R)
    return tt, tr


def _make_plif_kernel(tt, t_total, v_full):
    """Kernel over grid (n_r_tiles, n_time_blocks); runs tt time sub-steps."""
    needs_guard = (t_total % tt) != 0

    def kernel(coef_ref, dv_ref, s_ref, v_ref, v_state):
        tb = pl.program_id(1)

        # time_step == 0: init_neuro_states -> v = v_reset for this R tile.
        @pl.when(tb == 0)
        def _():
            v_state[...] = jnp.full_like(v_state, V_RESET)

        a = coef_ref[0]   # sigmoid(w)
        b = coef_ref[1]   # 1 - sigmoid(w)

        # TT time sub-steps per grid step.  tt <= 32, so a static unroll keeps
        # every Ref index constant (cheap, robust stores for narrow dtypes).
        for i in range(tt):
            dv = dv_ref[i].astype(jnp.float32)          # (TR, COLS)
            v_prev = v_state[...]
            # charge: v + (dv - (v - v_reset)) * sigmoid(w) == b*v + a*dv (+ a*v_reset)
            v_new = b * v_prev + a * dv
            if V_RESET != 0.0:
                v_new = v_new + a * V_RESET
            # spike (ATan surrogate forward == heaviside) + hard reset.
            fired = v_new >= V_THRESHOLD
            v_after = jnp.where(fired, jnp.float32(V_RESET), v_new)
            if needs_guard:
                # ragged last time block: never advance the state past step T-1.
                keep = (tb * tt + i) < t_total
                v_after = jnp.where(keep, v_after, v_prev)
            v_state[...] = v_after
            s_ref[i] = fired.astype(jnp.float32).astype(s_ref.dtype)
            if v_full:
                v_ref[i] = v_after.astype(v_ref.dtype)

        if not v_full:
            # Final-v mode: the v block is resident across the time axis; only
            # the last write is flushed to HBM.
            @pl.when(tb == pl.num_programs(1) - 1)
            def _():
                v_ref[...] = v_state[...].astype(v_ref.dtype)

    return kernel


def plif_forward(dv_seq, w, *, spike_dtype=None, v_dtype=None, v_mode="full",
                 extra_input_buffering=False):
    """PLIFNode forward unrolled over time.

    dv_seq: [T, *feat] voltage increments (e.g. [T, B, C, H, W]).
    w:      scalar learnable parameter (tau = 1 / sigmoid(w)).
    spike_dtype / v_dtype: output dtypes (None -> input dtype).  Spikes are
        exactly 0/1, so int8/bf16 spikes are lossless and cut HBM write traffic.
    v_mode: "full"  -> per-step membrane potential [T, *feat] (module semantics)
            "final" -> only the last step's v, shape [*feat] (saves the largest
                       output stream when the caller only consumes spikes).
    Returns (spikes, v).
    """
    assert v_mode in ("full", "final")
    v_full = v_mode == "full"

    T = dv_seq.shape[0]
    feat_shape = dv_seq.shape[1:]
    total = math.prod(feat_shape)

    in_dtype = dv_seq.dtype
    spike_dtype = jnp.dtype(in_dtype if spike_dtype is None else spike_dtype)
    v_dtype = jnp.dtype(in_dtype if v_dtype is None else v_dtype)

    cols, pad = _choose_layout(total)
    total_p = total + pad
    R = total_p // cols

    dv_flat = dv_seq.reshape(T, total)
    if pad:
        dv_flat = jnp.pad(dv_flat, ((0, 0), (0, pad)))
    dv_flat = dv_flat.reshape(T, R, cols)          # keep native input dtype

    in_b = jnp.dtype(in_dtype).itemsize
    s_b = spike_dtype.itemsize
    v_b = v_dtype.itemsize
    stream = 2 * (in_b + s_b + (v_b if v_full else 0))   # double-buffered streams
    TT, TR = _choose_tiles(T, R, cols, stream)
    n_r = pl.cdiv(R, TR)
    n_tb = pl.cdiv(T, TT)

    # sigmoid(w) and 1 - sigmoid(w) computed once, resident in SMEM.
    a = jax.nn.sigmoid(jnp.asarray(w, jnp.float32))
    coefs = jnp.stack([a, 1.0 - a])

    idx_map = lambda r, t: (t, r, 0)
    if extra_input_buffering:
        # Triple-buffer the input when tiles stay tiny (<~512 KiB) after T-blocking.
        dv_spec = pl.BlockSpec((TT, TR, cols), idx_map, pipeline_mode=pl.Buffered(3))
    else:
        dv_spec = pl.BlockSpec((TT, TR, cols), idx_map)
    s_spec = pl.BlockSpec((TT, TR, cols), idx_map)
    if v_full:
        v_shape = jax.ShapeDtypeStruct((T, R, cols), v_dtype)
        v_spec = pl.BlockSpec((TT, TR, cols), idx_map)
    else:
        v_shape = jax.ShapeDtypeStruct((R, cols), v_dtype)
        v_spec = pl.BlockSpec((TR, cols), lambda r, t: (r, 0))   # resident over t

    grid_spec = pltpu.PrefetchScalarGridSpec(
        num_scalar_prefetch=0,
        grid=(n_r, n_tb),                 # time innermost: sequential recurrence
        in_specs=[
            pl.BlockSpec(memory_space=pltpu.MemorySpace.SMEM),   # [a, 1-a]
            dv_spec,
        ],
        out_specs=[s_spec, v_spec],
        scratch_shapes=[pltpu.VMEM((TR, cols), jnp.float32)],    # carried membrane v
    )

    n_elem = T * total
    cost = pl.CostEstimate(
        flops=5 * n_elem,
        transcendentals=0,
        bytes_accessed=n_elem * (in_b + s_b) + (n_elem if v_full else total) * v_b,
    )

    kernel = _make_plif_kernel(TT, T, v_full)
    s_flat, v_flat = pl.pallas_call(
        kernel,
        out_shape=(jax.ShapeDtypeStruct((T, R, cols), spike_dtype), v_shape),
        grid_spec=grid_spec,
        compiler_params=pltpu.CompilerParams(
            dimension_semantics=("parallel", "arbitrary"),
            vmem_limit_bytes=_VMEM_LIMIT,
        ),
        cost_estimate=cost,
    )(coefs, dv_flat)

    if pad:
        s_out = s_flat.reshape(T, total_p)[:, :total].reshape((T,) + feat_shape)
        if v_full:
            v_out = v_flat.reshape(T, total_p)[:, :total].reshape((T,) + feat_shape)
        else:
            v_out = v_flat.reshape(total_p)[:total].reshape(feat_shape)
    else:
        s_out = s_flat.reshape((T,) + feat_shape)
        v_out = v_flat.reshape((T,) + feat_shape) if v_full else v_flat.reshape(feat_shape)
    return s_out, v_out


def plif_reference(dv_seq, w):
    """Pure-JAX reference mirroring PLIFNode.forward applied over t.

    Uses the algebraically identical form (1-a)*v + a*dv (+ a*v_reset) so it
    matches the kernel's f32 arithmetic exactly.
    """
    a = jax.nn.sigmoid(jnp.asarray(w, jnp.float32))
    b = 1.0 - a
    T = dv_seq.shape[0]
    v = jnp.full(dv_seq.shape[1:], V_RESET, dtype=jnp.float32)
    s_list, v_list = [], []
    for t in range(T):
        dv = dv_seq[t].astype(jnp.float32)
        v = b * v + a * dv + a * V_RESET
        fired = v >= V_THRESHOLD
        s = fired.astype(jnp.float32)
        v = jnp.where(fired, jnp.float32(V_RESET), v)
        s_list.append(s)
        v_list.append(v)
    return jnp.stack(s_list), jnp.stack(v_list)


if __name__ == "__main__":
    # Deterministic parameter init, per PLIFNode.__init__ (non-liquid branch):
    #   init_w = -log(init_tau - 1)  (= 0.0 for init_tau = 2.0)
    init_w = -math.log(INIT_TAU - 1.0)
    w = jnp.float32(init_w)

    # Small example input: T=8 time steps of NCHW [2, 4, 16, 16].
    key = jax.random.PRNGKey(0)
    dv_seq = 1.5 * jax.random.normal(key, (8, 2, 4, 16, 16), dtype=jnp.float32)

    s_ref, v_ref = plif_reference(dv_seq, w)

    # 1) Semantics-preserving path: f32 in / f32 out, per-step membrane potential.
    s, v = plif_forward(dv_seq, w)
    s = jax.block_until_ready(s)
    v = jax.block_until_ready(v)
    assert s.shape == dv_seq.shape and v.shape == dv_seq.shape
    assert jnp.array_equal(s, s_ref), "spike mismatch"
    assert jnp.allclose(v, v_ref, atol=1e-5), "voltage mismatch"

    # 2) Reduced-HBM-traffic config from the perf review: int8 spikes (exact 0/1),
    #    bf16 membrane potential, and final-step v only.
    s8, v_last = plif_forward(dv_seq, w, spike_dtype=jnp.int8,
                              v_dtype=jnp.bfloat16, v_mode="final")
    s8 = jax.block_until_ready(s8)
    v_last = jax.block_until_ready(v_last)
    assert jnp.array_equal(s8.astype(jnp.float32), s_ref), "int8 spike mismatch"
    assert jnp.allclose(v_last.astype(jnp.float32), v_ref[-1],
                        atol=5e-2, rtol=5e-2), "final-v mismatch"

    print("KERNEL_OK")
</pallas_src>

<mosaic_0001>
module attributes {stable_mosaic.version = 11 : i64} {
  func.func @kernel(%arg0: i32, %arg1: i32, %arg2: memref<2xf32, #tpu.memory_space<smem>>, %arg3: memref<8x4x512xf32, #tpu.memory_space<vmem>>, %arg4: memref<8x4x512xf32, #tpu.memory_space<vmem>>, %arg5: memref<8x4x512xf32, #tpu.memory_space<vmem>>, %arg6: memref<4x512xf32, #tpu.memory_space<vmem>>) attributes {dimension_semantics = [#tpu.dimension_semantics<parallel>, #tpu.dimension_semantics<arbitrary>], iteration_bounds = array<i64: 1, 1>, scalar_prefetch = 0 : i64, scratch_operands = 1 : i64, tpu.core_type = #tpu.core_type<tc>, window_params = [{transform_indices = @transform_0, window_bounds = array<i64: 2>}, {transform_indices = @transform_1, window_bounds = array<i64: 8, 4, 512>}, {transform_indices = @transform_2, window_bounds = array<i64: 8, 4, 512>}, {transform_indices = @transform_3, window_bounds = array<i64: 8, 4, 512>}]} {
    %c0_i32 = arith.constant 0 : i32
    %0 = arith.cmpi eq, %arg1, %c0_i32 : i32
    %1 = arith.extui %0 : i1 to i32
    %c0_i32_0 = arith.constant 0 : i32
    %2 = arith.cmpi ne, %1, %c0_i32_0 : i32
    scf.if %2 {
      %cst_114 = arith.constant 0.000000e+00 : f32
      %173 = vector.broadcast %cst_114 : f32 to vector<4x512xf32>
      %c0_115 = arith.constant 0 : index
      %c0_116 = arith.constant 0 : index
      %174 = vector.load %arg6[%c0_115, %c0_116] : memref<4x512xf32, #tpu.memory_space<vmem>>, vector<4x512xf32>
      tpu.vector_store %arg6[%c0_115, %c0_116], %173 {strides = array<i32>} : memref<4x512xf32, #tpu.memory_space<vmem>>, vector<4x512xf32>,
    } else {
    }
    %c0 = arith.constant 0 : index
    %3 = memref.load %arg2[%c0] : memref<2xf32, #tpu.memory_space<smem>>
    %c1 = arith.constant 1 : index
    %4 = memref.load %arg2[%c1] : memref<2xf32, #tpu.memory_space<smem>>
    %c0_1 = arith.constant 0 : index
    %c0_2 = arith.constant 0 : index
    %c0_3 = arith.constant 0 : index
    %5 = vector.load %arg3[%c0_1, %c0_2, %c0_3] : memref<8x4x512xf32, #tpu.memory_space<vmem>>, vector<1x4x512xf32>
    %6 = vector.shape_cast %5 : vector<1x4x512xf32> to vector<4x512xf32>
    %c0_4 = arith.constant 0 : index
    %c0_5 = arith.constant 0 : index
    %7 = vector.load %arg6[%c0_4, %c0_5] : memref<4x512xf32, #tpu.memory_space<vmem>>, vector<4x512xf32>
    %8 = vector.broadcast %4 : f32 to vector<4x512xf32>
    %9 = arith.mulf %8, %7 : vector<4x512xf32>
    %10 = vector.broadcast %3 : f32 to vector<4x512xf32>
    %11 = arith.mulf %10, %6 : vector<4x512xf32>
    %12 = arith.addf %9, %11 : vector<4x512xf32>
    %cst = arith.constant 1.000000e+00 : f32
    %13 = vector.broadcast %cst : f32 to vector<4x512xf32>
    %14 = arith.cmpf oge, %12, %13 : vector<4x512xf32>
    %cst_6 = arith.constant 0.000000e+00 : f32
    %15 = vector.broadcast %cst_6 : f32 to vector<4x512xf32>
    %16 = arith.select %14, %15, %12 : vector<4x512xi1>, vector<4x512xf32>
    %c0_7 = arith.constant 0 : index
    %c0_8 = arith.constant 0 : index
    %17 = vector.load %arg6[%c0_7, %c0_8] : memref<4x512xf32, #tpu.memory_space<vmem>>, vector<4x512xf32>
    tpu.vector_store %arg6[%c0_7, %c0_8], %16 {strides = array<i32>} : memref<4x512xf32, #tpu.memory_space<vmem>>, vector<4x512xf32>,
    %18 = arith.extui %14 : vector<4x512xi1> to vector<4x512xi32>
    %19 = arith.sitofp %18 : vector<4x512xi32> to vector<4x512xf32>
    %c0_9 = arith.constant 0 : index
    %c0_10 = arith.constant 0 : index
    %c0_11 = arith.constant 0 : index
    %20 = vector.load %arg4[%c0_9, %c0_10, %c0_11] : memref<8x4x512xf32, #tpu.memory_space<vmem>>, vector<1x4x512xf32>
    %21 = vector.shape_cast %20 : vector<1x4x512xf32> to vector<4x512xf32>
    %22 = vector.shape_cast %19 : vector<4x512xf32> to vector<1x4x512xf32>
    tpu.vector_store %arg4[%c0_9, %c0_10, %c0_11], %22 {strides = array<i32>} : memref<8x4x512xf32, #tpu.memory_space<vmem>>, vector<1x4x512xf32>,
    %c0_12 = arith.constant 0 : index
    %c0_13 = arith.constant 0 : index
    %c0_14 = arith.constant 0 : index
    %23 = vector.load %arg5[%c0_12, %c0_13, %c0_14] : memref<8x4x512xf32, #tpu.memory_space<vmem>>, vector<1x4x512xf32>
    %24 = vector.shape_cast %23 : vector<1x4x512xf32> to vector<4x512xf32>
    %25 = vector.shape_cast %16 : vector<4x512xf32> to vector<1x4x512xf32>
    tpu.vector_store %arg5[%c0_12, %c0_13, %c0_14], %25 {strides = array<i32>} : memref<8x4x512xf32, #tpu.memory_space<vmem>>, vector<1x4x512xf32>,
    %c1_15 = arith.constant 1 : index
    %c0_16 = arith.constant 0 : index
    %c0_17 = arith.constant 0 : index
    %26 = vector.load %arg3[%c1_15, %c0_16, %c0_17] : memref<8x4x512xf32, #tpu.memory_space<vmem>>, vector<1x4x512xf32>
    %27 = vector.shape_cast %26 : vector<1x4x512xf32> to vector<4x512xf32>
    %c0_18 = arith.constant 0 : index
    %c0_19 = arith.constant 0 : index
    %28 = vector.load %arg6[%c0_18, %c0_19] : memref<4x512xf32, #tpu.memory_space<vmem>>, vector<4x512xf32>
    %29 = vector.broadcast %4 : f32 to vector<4x512xf32>
    %30 = arith.mulf %29, %28 : vector<4x512xf32>
    %31 = vector.broadcast %3 : f32 to vector<4x512xf32>
    %32 = arith.mulf %31, %27 : vector<4x512xf32>
    %33 = arith.addf %30, %32 : vector<4x512xf32>
    %cst_20 = arith.constant 1.000000e+00 : f32
    %34 = vector.broadcast %cst_20 : f32 to vector<4x512xf32>
    %35 = arith.cmpf oge, %33, %34 : vector<4x512xf32>
    %cst_21 = arith.constant 0.000000e+00 : f32
    %36 = vector.broadcast %cst_21 : f32 to vector<4x512xf32>
    %37 = arith.select %35, %36, %33 : vector<4x512xi1>, vector<4x512xf32>
    %c0_22 = arith.constant 0 : index
    %c0_23 = arith.constant 0 : index
    %38 = vector.load %arg6[%c0_22, %c0_23] : memref<4x512xf32, #tpu.memory_space<vmem>>, vector<4x512xf32>
    tpu.vector_store %arg6[%c0_22, %c0_23], %37 {strides = array<i32>} : memref<4x512xf32, #tpu.memory_space<vmem>>, vector<4x512xf32>,
    %39 = arith.extui %35 : vector<4x512xi1> to vector<4x512xi32>
    %40 = arith.sitofp %39 : vector<4x512xi32> to vector<4x512xf32>
    %c1_24 = arith.constant 1 : index
    %c0_25 = arith.constant 0 : index
    %c0_26 = arith.constant 0 : index
    %41 = vector.load %arg4[%c1_24, %c0_25, %c0_26] : memref<8x4x512xf32, #tpu.memory_space<vmem>>, vector<1x4x512xf32>
    %42 = vector.shape_cast %41 : vector<1x4x512xf32> to vector<4x512xf32>
    %43 = vector.shape_cast %40 : vector<4x512xf32> to vector<1x4x512xf32>
    tpu.vector_store %arg4[%c1_24, %c0_25, %c0_26], %43 {strides = array<i32>} : memref<8x4x512xf32, #tpu.memory_space<vmem>>, vector<1x4x512xf32>,
    %c1_27 = arith.constant 1 : index
    %c0_28 = arith.constant 0 : index
    %c0_29 = arith.constant 0 : index
    %44 = vector.load %arg5[%c1_27, %c0_28, %c0_29] : memref<8x4x512xf32, #tpu.memory_space<vmem>>, vector<1x4x512xf32>
    %45 = vector.shape_cast %44 : vector<1x4x512xf32> to vector<4x512xf32>
    %46 = vector.shape_cast %37 : vector<4x512xf32> to vector<1x4x512xf32>
    tpu.vector_store %arg5[%c1_27, %c0_28, %c0_29], %46 {strides = array<i32>} : memref<8x4x512xf32, #tpu.memory_space<vmem>>, vector<1x4x512xf32>,
    %c2 = arith.constant 2 : index
    %c0_30 = arith.constant 0 : index
    %c0_31 = arith.constant 0 : index
    %47 = vector.load %arg3[%c2, %c0_30, %c0_31] : memref<8x4x512xf32, #tpu.memory_space<vmem>>, vector<1x4x512xf32>
    %48 = vector.shape_cast %47 : vector<1x4x512xf32> to vector<4x512xf32>
    %c0_32 = arith.constant 0 : index
    %c0_33 = arith.constant 0 : index
    %49 = vector.load %arg6[%c0_32, %c0_33] : memref<4x512xf32, #tpu.memory_space<vmem>>, vector<4x512xf32>
    %50 = vector.broadcast %4 : f32 to vector<4x512xf32>
    %51 = arith.mulf %50, %49 : vector<4x512xf32>
    %52 = vector.broadcast %3 : f32 to vector<4x512xf32>
    %53 = arith.mulf %52, %48 : vector<4x512xf32>
    %54 = arith.addf %51, %53 : vector<4x512xf32>
    %cst_34 = arith.constant 1.000000e+00 : f32
    %55 = vector.broadcast %cst_34 : f32 to vector<4x512xf32>
    %56 = arith.cmpf oge, %54, %55 : vector<4x512xf32>
    %cst_35 = arith.constant 0.000000e+00 : f32
    %57 = vector.broadcast %cst_35 : f32 to vector<4x512xf32>
    %58 = arith.select %56, %57, %54 : vector<4x512xi1>, vector<4x512xf32>
    %c0_36 = arith.constant 0 : index
    %c0_37 = arith.constant 0 : index
    %59 = vector.load %arg6[%c0_36, %c0_37] : memref<4x512xf32, #tpu.memory_space<vmem>>, vector<4x512xf32>
    tpu.vector_store %arg6[%c0_36, %c0_37], %58 {strides = array<i32>} : memref<4x512xf32, #tpu.memory_space<vmem>>, vector<4x512xf32>,
    %60 = arith.extui %56 : vector<4x512xi1> to vector<4x512xi32>
    %61 = arith.sitofp %60 : vector<4x512xi32> to vector<4x512xf32>
    %c2_38 = arith.constant 2 : index
    %c0_39 = arith.constant 0 : index
    %c0_40 = arith.constant 0 : index
    %62 = vector.load %arg4[%c2_38, %c0_39, %c0_40] : memref<8x4x512xf32, #tpu.memory_space<vmem>>, vector<1x4x512xf32>
    %63 = vector.shape_cast %62 : vector<1x4x512xf32> to vector<4x512xf32>
    %64 = vector.shape_cast %61 : vector<4x512xf32> to vector<1x4x512xf32>
    tpu.vector_store %arg4[%c2_38, %c0_39, %c0_40], %64 {strides = array<i32>} : memref<8x4x512xf32, #tpu.memory_space<vmem>>, vector<1x4x512xf32>,
    %c2_41 = arith.constant 2 : index
    %c0_42 = arith.constant 0 : index
    %c0_43 = arith.constant 0 : index
    %65 = vector.load %arg5[%c2_41, %c0_42, %c0_43] : memref<8x4x512xf32, #tpu.memory_space<vmem>>, vector<1x4x512xf32>
    %66 = vector.shape_cast %65 : vector<1x4x512xf32> to vector<4x512xf32>
    %67 = vector.shape_cast %58 : vector<4x512xf32> to vector<1x4x512xf32>
    tpu.vector_store %arg5[%c2_41, %c0_42, %c0_43], %67 {strides = array<i32>} : memref<8x4x512xf32, #tpu.memory_space<vmem>>, vector<1x4x512xf32>,
    %c3 = arith.constant 3 : index
    %c0_44 = arith.constant 0 : index
    %c0_45 = arith.constant 0 : index
    %68 = vector.load %arg3[%c3, %c0_44, %c0_45] : memref<8x4x512xf32, #tpu.memory_space<vmem>>, vector<1x4x512xf32>
    %69 = vector.shape_cast %68 : vector<1x4x512xf32> to vector<4x512xf32>
    %c0_46 = arith.constant 0 : index
    %c0_47 = arith.constant 0 : index
    %70 = vector.load %arg6[%c0_46, %c0_47] : memref<4x512xf32, #tpu.memory_space<vmem>>, vector<4x512xf32>
    %71 = vector.broadcast %4 : f32 to vector<4x512xf32>
    %72 = arith.mulf %71, %70 : vector<4x512xf32>
    %73 = vector.broadcast %3 : f32 to vector<4x512xf32>
    %74 = arith.mulf %73, %69 : vector<4x512xf32>
    %75 = arith.addf %72, %74 : vector<4x512xf32>
    %cst_48 = arith.constant 1.000000e+00 : f32
    %76 = vector.broadcast %cst_48 : f32 to vector<4x512xf32>
    %77 = arith.cmpf oge, %75, %76 : vector<4x512xf32>
    %cst_49 = arith.constant 0.000000e+00 : f32
    %78 = vector.broadcast %cst_49 : f32 to vector<4x512xf32>
    %79 = arith.select %77, %78, %75 : vector<4x512xi1>, vector<4x512xf32>
    %c0_50 = arith.constant 0 : index
    %c0_51 = arith.constant 0 : index
    %80 = vector.load %arg6[%c0_50, %c0_51] : memref<4x512xf32, #tpu.memory_space<vmem>>, vector<4x512xf32>
    tpu.vector_store %arg6[%c0_50, %c0_51], %79 {strides = array<i32>} : memref<4x512xf32, #tpu.memory_space<vmem>>, vector<4x512xf32>,
    %81 = arith.extui %77 : vector<4x512xi1> to vector<4x512xi32>
    %82 = arith.sitofp %81 : vector<4x512xi32> to vector<4x512xf32>
    %c3_52 = arith.constant 3 : index
    %c0_53 = arith.constant 0 : index
    %c0_54 = arith.constant 0 : index
    %83 = vector.load %arg4[%c3_52, %c0_53, %c0_54] : memref<8x4x512xf32, #tpu.memory_space<vmem>>, vector<1x4x512xf32>
    %84 = vector.shape_cast %83 : vector<1x4x512xf32> to vector<4x512xf32>
    %85 = vector.shape_cast %82 : vector<4x512xf32> to vector<1x4x512xf32>
    tpu.vector_store %arg4[%c3_52, %c0_53, %c0_54], %85 {strides = array<i32>} : memref<8x4x512xf32, #tpu.memory_space<vmem>>, vector<1x4x512xf32>,
    %c3_55 = arith.constant 3 : index
    %c0_56 = arith.constant 0 : index
    %c0_57 = arith.constant 0 : index
    %86 = vector.load %arg5[%c3_55, %c0_56, %c0_57] : memref<8x4x512xf32, #tpu.memory_space<vmem>>, vector<1x4x512xf32>
    %87 = vector.shape_cast %86 : vector<1x4x512xf32> to vector<4x512xf32>
    %88 = vector.shape_cast %79 : vector<4x512xf32> to vector<1x4x512xf32>
    tpu.vector_store %arg5[%c3_55, %c0_56, %c0_57], %88 {strides = array<i32>} : memref<8x4x512xf32, #tpu.memory_space<vmem>>, vector<1x4x512xf32>,
    %c4 = arith.constant 4 : index
    %c0_58 = arith.constant 0 : index
    %c0_59 = arith.constant 0 : index
    %89 = vector.load %arg3[%c4, %c0_58, %c0_59] : memref<8x4x512xf32, #tpu.memory_space<vmem>>, vector<1x4x512xf32>
    %90 = vector.shape_cast %89 : vector<1x4x512xf32> to vector<4x512xf32>
    %c0_60 = arith.constant 0 : index
    %c0_61 = arith.constant 0 : index
    %91 = vector.load %arg6[%c0_60, %c0_61] : memref<4x512xf32, #tpu.memory_space<vmem>>, vector<4x512xf32>
    %92 = vector.broadcast %4 : f32 to vector<4x512xf32>
    %93 = arith.mulf %92, %91 : vector<4x512xf32>
    %94 = vector.broadcast %3 : f32 to vector<4x512xf32>
    %95 = arith.mulf %94, %90 : vector<4x512xf32>
    %96 = arith.addf %93, %95 : vector<4x512xf32>
    %cst_62 = arith.constant 1.000000e+00 : f32
    %97 = vector.broadcast %cst_62 : f32 to vector<4x512xf32>
    %98 = arith.cmpf oge, %96, %97 : vector<4x512xf32>
    %cst_63 = arith.constant 0.000000e+00 : f32
    %99 = vector.broadcast %cst_63 : f32 to vector<4x512xf32>
    %100 = arith.select %98, %99, %96 : vector<4x512xi1>, vector<4x512xf32>
    %c0_64 = arith.constant 0 : index
    %c0_65 = arith.constant 0 : index
    %101 = vector.load %arg6[%c0_64, %c0_65] : memref<4x512xf32, #tpu.memory_space<vmem>>, vector<4x512xf32>
    tpu.vector_store %arg6[%c0_64, %c0_65], %100 {strides = array<i32>} : memref<4x512xf32, #tpu.memory_space<vmem>>, vector<4x512xf32>,
    %102 = arith.extui %98 : vector<4x512xi1> to vector<4x512xi32>
    %103 = arith.sitofp %102 : vector<4x512xi32> to vector<4x512xf32>
    %c4_66 = arith.constant 4 : index
    %c0_67 = arith.constant 0 : index
    %c0_68 = arith.constant 0 : index
    %104 = vector.load %arg4[%c4_66, %c0_67, %c0_68] : memref<8x4x512xf32, #tpu.memory_space<vmem>>, vector<1x4x512xf32>
    %105 = vector.shape_cast %104 : vector<1x4x512xf32> to vector<4x512xf32>
    %106 = vector.shape_cast %103 : vector<4x512xf32> to vector<1x4x512xf32>
    tpu.vector_store %arg4[%c4_66, %c0_67, %c0_68], %106 {strides = array<i32>} : memref<8x4x512xf32, #tpu.memory_space<vmem>>, vector<1x4x512xf32>,
    %c4_69 = arith.constant 4 : index
    %c0_70 = arith.constant 0 : index
    %c0_71 = arith.constant 0 : index
    %107 = vector.load %arg5[%c4_69, %c0_70, %c0_71] : memref<8x4x512xf32, #tpu.memory_space<vmem>>, vector<1x4x512xf32>
    %108 = vector.shape_cast %107 : vector<1x4x512xf32> to vector<4x512xf32>
    %109 = vector.shape_cast %100 : vector<4x512xf32> to vector<1x4x512xf32>
    tpu.vector_store %arg5[%c4_69, %c0_70, %c0_71], %109 {strides = array<i32>} : memref<8x4x512xf32, #tpu.memory_space<vmem>>, vector<1x4x512xf32>,
    %c5 = arith.constant 5 : index
    %c0_72 = arith.constant 0 : index
    %c0_73 = arith.constant 0 : index
    %110 = vector.load %arg3[%c5, %c0_72, %c0_73] : memref<8x4x512xf32, #tpu.memory_space<vmem>>, vector<1x4x512xf32>
    %111 = vector.shape_cast %110 : vector<1x4x512xf32> to vector<4x512xf32>
    %c0_74 = arith.constant 0 : index
    %c0_75 = arith.constant 0 : index
    %112 = vector.load %arg6[%c0_74, %c0_75] : memref<4x512xf32, #tpu.memory_space<vmem>>, vector<4x512xf32>
    %113 = vector.broadcast %4 : f32 to vector<4x512xf32>
    %114 = arith.mulf %113, %112 : vector<4x512xf32>
    %115 = vector.broadcast %3 : f32 to vector<4x512xf32>
    %116 = arith.mulf %115, %111 : vector<4x512xf32>
    %117 = arith.addf %114, %116 : vector<4x512xf32>
    %cst_76 = arith.constant 1.000000e+00 : f32
    %118 = vector.broadcast %cst_76 : f32 to vector<4x512xf32>
    %119 = arith.cmpf oge, %117, %118 : vector<4x512xf32>
    %cst_77 = arith.constant 0.000000e+00 : f32
    %120 = vector.broadcast %cst_77 : f32 to vector<4x512xf32>
    %121 = arith.select %119, %120, %117 : vector<4x512xi1>, vector<4x512xf32>
    %c0_78 = arith.constant 0 : index
    %c0_79 = arith.constant 0 : index
    %122 = vector.load %arg6[%c0_78, %c0_79] : memref<4x512xf32, #tpu.memory_space<vmem>>, vector<4x512xf32>
    tpu.vector_store %arg6[%c0_78, %c0_79], %121 {strides = array<i32>} : memref<4x512xf32, #tpu.memory_space<vmem>>, vector<4x512xf32>,
    %123 = arith.extui %119 : vector<4x512xi1> to vector<4x512xi32>
    %124 = arith.sitofp %123 : vector<4x512xi32> to vector<4x512xf32>
    %c5_80 = arith.constant 5 : index
    %c0_81 = arith.constant 0 : index
    %c0_82 = arith.constant 0 : index
    %125 = vector.load %arg4[%c5_80, %c0_81, %c0_82] : memref<8x4x512xf32, #tpu.memory_space<vmem>>, vector<1x4x512xf32>
    %126 = vector.shape_cast %125 : vector<1x4x512xf32> to vector<4x512xf32>
    %127 = vector.shape_cast %124 : vector<4x512xf32> to vector<1x4x512xf32>
    tpu.vector_store %arg4[%c5_80, %c0_81, %c0_82], %127 {strides = array<i32>} : memref<8x4x512xf32, #tpu.memory_space<vmem>>, vector<1x4x512xf32>,
    %c5_83 = arith.constant 5 : index
    %c0_84 = arith.constant 0 : index
    %c0_85 = arith.constant 0 : index
    %128 = vector.load %arg5[%c5_83, %c0_84, %c0_85] : memref<8x4x512xf32, #tpu.memory_space<vmem>>, vector<1x4x512xf32>
    %129 = vector.shape_cast %128 : vector<1x4x512xf32> to vector<4x512xf32>
    %130 = vector.shape_cast %121 : vector<4x512xf32> to vector<1x4x512xf32>
    tpu.vector_store %arg5[%c5_83, %c0_84, %c0_85], %130 {strides = array<i32>} : memref<8x4x512xf32, #tpu.memory_space<vmem>>, vector<1x4x512xf32>,
    %c6 = arith.constant 6 : index
    %c0_86 = arith.constant 0 : index
    %c0_87 = arith.constant 0 : index
    %131 = vector.load %arg3[%c6, %c0_86, %c0_87] : memref<8x4x512xf32, #tpu.memory_space<vmem>>, vector<1x4x512xf32>
    %132 = vector.shape_cast %131 : vector<1x4x512xf32> to vector<4x512xf32>
    %c0_88 = arith.constant 0 : index
    %c0_89 = arith.constant 0 : index
    %133 = vector.load %arg6[%c0_88, %c0_89] : memref<4x512xf32, #tpu.memory_space<vmem>>, vector<4x512xf32>
    %134 = vector.broadcast %4 : f32 to vector<4x512xf32>
    %135 = arith.mulf %134, %133 : vector<4x512xf32>
    %136 = vector.broadcast %3 : f32 to vector<4x512xf32>
    %137 = arith.mulf %136, %132 : vector<4x512xf32>
    %138 = arith.addf %135, %137 : vector<4x512xf32>
    %cst_90 = arith.constant 1.000000e+00 : f32
    %139 = vector.broadcast %cst_90 : f32 to vector<4x512xf32>
    %140 = arith.cmpf oge, %138, %139 : vector<4x512xf32>
    %cst_91 = arith.constant 0.000000e+00 : f32
    %141 = vector.broadcast %cst_91 : f32 to vector<4x512xf32>
    %142 = arith.select %140, %141, %138 : vector<4x512xi1>, vector<4x512xf32>
    %c0_92 = arith.constant 0 : index
    %c0_93 = arith.constant 0 : index
    %143 = vector.load %arg6[%c0_92, %c0_93] : memref<4x512xf32, #tpu.memory_space<vmem>>, vector<4x512xf32>
    tpu.vector_store %arg6[%c0_92, %c0_93], %142 {strides = array<i32>} : memref<4x512xf32, #tpu.memory_space<vmem>>, vector<4x512xf32>,
    %144 = arith.extui %140 : vector<4x512xi1> to vector<4x512xi32>
    %145 = arith.sitofp %144 : vector<4x512xi32> to vector<4x512xf32>
    %c6_94 = arith.constant 6 : index
    %c0_95 = arith.constant 0 : index
    %c0_96 = arith.constant 0 : index
    %146 = vector.load %arg4[%c6_94, %c0_95, %c0_96] : memref<8x4x512xf32, #tpu.memory_space<vmem>>, vector<1x4x512xf32>
    %147 = vector.shape_cast %146 : vector<1x4x512xf32> to vector<4x512xf32>
    %148 = vector.shape_cast %145 : vector<4x512xf32> to vector<1x4x512xf32>
    tpu.vector_store %arg4[%c6_94, %c0_95, %c0_96], %148 {strides = array<i32>} : memref<8x4x512xf32, #tpu.memory_space<vmem>>, vector<1x4x512xf32>,
    %c6_97 = arith.constant 6 : index
    %c0_98 = arith.constant 0 : index
    %c0_99 = arith.constant 0 : index
    %149 = vector.load %arg5[%c6_97, %c0_98, %c0_99] : memref<8x4x512xf32, #tpu.memory_space<vmem>>, vector<1x4x512xf32>
    %150 = vector.shape_cast %149 : vector<1x4x512xf32> to vector<4x512xf32>
    %151 = vector.shape_cast %142 : vector<4x512xf32> to vector<1x4x512xf32>
    tpu.vector_store %arg5[%c6_97, %c0_98, %c0_99], %151 {strides = array<i32>} : memref<8x4x512xf32, #tpu.memory_space<vmem>>, vector<1x4x512xf32>,
    %c7 = arith.constant 7 : index
    %c0_100 = arith.constant 0 : index
    %c0_101 = arith.constant 0 : index
    %152 = vector.load %arg3[%c7, %c0_100, %c0_101] : memref<8x4x512xf32, #tpu.memory_space<vmem>>, vector<1x4x512xf32>
    %153 = vector.shape_cast %152 : vector<1x4x512xf32> to vector<4x512xf32>
    %c0_102 = arith.constant 0 : index
    %c0_103 = arith.constant 0 : index
    %154 = vector.load %arg6[%c0_102, %c0_103] : memref<4x512xf32, #tpu.memory_space<vmem>>, vector<4x512xf32>
    %155 = vector.broadcast %4 : f32 to vector<4x512xf32>
    %156 = arith.mulf %155, %154 : vector<4x512xf32>
    %157 = vector.broadcast %3 : f32 to vector<4x512xf32>
    %158 = arith.mulf %157, %153 : vector<4x512xf32>
    %159 = arith.addf %156, %158 : vector<4x512xf32>
    %cst_104 = arith.constant 1.000000e+00 : f32
    %160 = vector.broadcast %cst_104 : f32 to vector<4x512xf32>
    %161 = arith.cmpf oge, %159, %160 : vector<4x512xf32>
    %cst_105 = arith.constant 0.000000e+00 : f32
    %162 = vector.broadcast %cst_105 : f32 to vector<4x512xf32>
    %163 = arith.select %161, %162, %159 : vector<4x512xi1>, vector<4x512xf32>
    %c0_106 = arith.constant 0 : index
    %c0_107 = arith.constant 0 : index
    %164 = vector.load %arg6[%c0_106, %c0_107] : memref<4x512xf32, #tpu.memory_space<vmem>>, vector<4x512xf32>
    tpu.vector_store %arg6[%c0_106, %c0_107], %163 {strides = array<i32>} : memref<4x512xf32, #tpu.memory_space<vmem>>, vector<4x512xf32>,
    %165 = arith.extui %161 : vector<4x512xi1> to vector<4x512xi32>
    %166 = arith.sitofp %165 : vector<4x512xi32> to vector<4x512xf32>
    %c7_108 = arith.constant 7 : index
    %c0_109 = arith.constant 0 : index
    %c0_110 = arith.constant 0 : index
    %167 = vector.load %arg4[%c7_108, %c0_109, %c0_110] : memref<8x4x512xf32, #tpu.memory_space<vmem>>, vector<1x4x512xf32>
    %168 = vector.shape_cast %167 : vector<1x4x512xf32> to vector<4x512xf32>
    %169 = vector.shape_cast %166 : vector<4x512xf32> to vector<1x4x512xf32>
    tpu.vector_store %arg4[%c7_108, %c0_109, %c0_110], %169 {strides = array<i32>} : memref<8x4x512xf32, #tpu.memory_space<vmem>>, vector<1x4x512xf32>,
    %c7_111 = arith.constant 7 : index
    %c0_112 = arith.constant 0 : index
    %c0_113 = arith.constant 0 : index
    %170 = vector.load %arg5[%c7_111, %c0_112, %c0_113] : memref<8x4x512xf32, #tpu.memory_space<vmem>>, vector<1x4x512xf32>
    %171 = vector.shape_cast %170 : vector<1x4x512xf32> to vector<4x512xf32>
    %172 = vector.shape_cast %163 : vector<4x512xf32> to vector<1x4x512xf32>
    tpu.vector_store %arg5[%c7_111, %c0_112, %c0_113], %172 {strides = array<i32>} : memref<8x4x512xf32, #tpu.memory_space<vmem>>, vector<1x4x512xf32>,
    return
  }
  func.func @transform_0(%arg0: i32, %arg1: i32) -> i32 {
    %c0_i32 = arith.constant 0 : i32
    %c0_i32_0 = arith.constant 0 : i32
    return %c0_i32 : i32
  }
  func.func @transform_1(%arg0: i32, %arg1: i32) -> (i32, i32, i32) {
    %c0_i32 = arith.constant 0 : i32
    %c0_i32_0 = arith.constant 0 : i32
    return %arg1, %arg0, %c0_i32 : i32, i32, i32
  }
  func.func @transform_2(%arg0: i32, %arg1: i32) -> (i32, i32, i32) {
    %c0_i32 = arith.constant 0 : i32
    %c0_i32_0 = arith.constant 0 : i32
    return %arg1, %arg0, %c0_i32 : i32, i32, i32
  }
  func.func @transform_3(%arg0: i32, %arg1: i32) -> (i32, i32, i32) {
    %c0_i32 = arith.constant 0 : i32
    %c0_i32_0 = arith.constant 0 : i32
    return %arg1, %arg0, %c0_i32 : i32, i32, i32
  }
}

</mosaic_0001>

<llo_original>
// kernel: tpu_custom_call.1
$region0: #{tpu_custom_call.1}
  #allocation0 [shape = 'u32[]', space=smem, size = 0x4, offset = 0x4, fixed_abs, tag = 'smem constant byte address 0x4 - core index']
  #allocation1 [shape = 'u32[144,128]{1,0:T(1,128)}', space=vmem, size = 0x12000, scoped, tag = 'internal scratch']
  #allocation2 [shape = 'f32[4,512]{1,0:T(4,128)}', space=vmem, size = 0x2000, scoped, tag = 'scratch operand']
  %s0 = inlined_call_operand.hbm [shape: f32[2], index: 0, kind: input, shape index: {}]
  %s1 = inlined_call_operand.hbm [shape: f32[8,4,512], index: 1, kind: input, shape index: {}]
  %s2 = inlined_call_operand.hbm [shape: f32[8,4,512], index: 2, kind: output, shape index: {0}]
  %s3 = inlined_call_operand.hbm [shape: f32[8,4,512], index: 3, kind: output, shape index: {1}]
  %4 = xla_tuple %s2, %s3
  %s5 = sld [smem:[#allocation0]]
  $region38: #{tpu_custom_call.1} parent=0
    _
  %s7 = ssub.s32 1, %s5
  %s8 = scalar_select 0, %s7, %s5
  $region1: #{tpu_custom_call.1} parent=0
    #allocation3 [shape = 'u8[512]{0}', space=smem, size = 0x200, scoped, tag = 'input window, operand 0, single buffered']
    #allocation4 [shape = 's32[1]{0}', space=sflag, size = 0x4, scoped, tag = 'scoped memory for tpu_custom_call.1']
    #allocation5 [shape = 's32[1]{0}', space=sflag, size = 0x4, scoped, tag = 'scoped memory for tpu_custom_call.1']
    #allocation6 [shape = 's32[1]{0}', space=sflag, size = 0x4, scoped, tag = 'scoped memory for tpu_custom_call.1']
    #allocation7 [shape = 'u8[65536]{0}', space=vmem, size = 0x10000, scoped, tag = 'input window, operand 1, single buffered']
    #allocation8 [shape = 'u8[65536]{0}', space=vmem, size = 0x10000, scoped, tag = 'output window, operand 0, single buffered']
    #allocation9 [shape = 'u8[65536]{0}', space=vmem, size = 0x10000, scoped, tag = 'output window, operand 1, single buffered']
    #allocation10 [shape = 's32[1]{0}', space=sflag, size = 0x4, scoped, tag = 'scoped memory for tpu_custom_call.1']
    %9 = vsyncpa [#allocation6], 0
    %10 = vsyncpa [#allocation4], 0
    %11 = vsyncpa [#allocation5], 0
    %12 = vsyncpa [#allocation10], 0
    // Predicated region
    $region2: #{tpu_custom_call.1} parent=1 // pred_check
      _
    $region3: #{tpu_custom_call.1} parent=1 // pred_check_branch
      %14 = sbr.rel (0) target = $region5
    $region4: #{tpu_custom_call.1} parent=1 // pred_region
      %s16 = ssub.s32 16, 16
      %17 = vsyncadd [#allocation6], %s16
      %20 = dma.hbm_to_smem %s0, 16, [#allocation3], [#allocation6]
    $region5: #{tpu_custom_call.1} parent=1 // pred_fallthru
      _
    // Predicated region
    $region6: #{tpu_custom_call.1} parent=1 // pred_check
      _
    $region7: #{tpu_custom_call.1} parent=1 // pred_check_branch
      %22 = sbr.rel (0) target = $region9
    $region8: #{tpu_custom_call.1} parent=1 // pred_region
      %s24 = ssub.s32 2048, 2048
      %25 = vsyncadd [#allocation4], %s24
      %s26 = sshll.u32 [#allocation7], 4
      %s27 = int_to_ptr.vmem [resolvable:$true] %s26
      %32 = dma.hbm_to_vmem [thread:$0]  %s1, 2048, %s27, [#allocation4], 256, 256, 16
    $region9: #{tpu_custom_call.1} parent=1 // pred_fallthru
      _
    // Predicated region
    $region10: #{tpu_custom_call.1} parent=1 // pred_check
      _
    $region11: #{tpu_custom_call.1} parent=1 // pred_check_branch
      %34 = sbr.rel (0) target = $region13
    $region12: #{tpu_custom_call.1} parent=1 // pred_region
      %35 = dma.done [#allocation6], 16
    $region13: #{tpu_custom_call.1} parent=1 // pred_fallthru
      _
    // Predicated region
    $region14: #{tpu_custom_call.1} parent=1 // pred_check
      _
    $region15: #{tpu_custom_call.1} parent=1 // pred_check_branch
      %37 = sbr.rel (0) target = $region17
    $region16: #{tpu_custom_call.1} parent=1 // pred_region
      %38 = dma.done [#allocation4], 2048
    $region17: #{tpu_custom_call.1} parent=1 // pred_fallthru
      _
    %39 = sfence
    %p40 = scmp.eq.s32.totalorder 0, 0
    // Predicated region
    $region18: #{tpu_custom_call.1} parent=1 // pred_check
      %p41 = pneg %p40
    $region19: #{tpu_custom_call.1} parent=1 // pred_check_branch
      %43 = sbr.rel (%p41) target = $region21
    $region20: #{tpu_custom_call.1} parent=1 // pred_region
      %44 = vst [vmem:[#allocation2] sm:$0xff] 0.0
      %45 = vst [vmem:[#allocation2 + $0x8] sm:$0xff] 0.0
    $region21: #{tpu_custom_call.1} parent=1 // pred_fallthru
      _
    %s46 = sld [smem:[#allocation3]]
    %s47 = sld [smem:[#allocation3 + $0x1]]
    %v48 = vld [vmem:[#allocation7] sm:$0xff]
    %v49 = vld [vmem:[#allocation7 + $0x8] sm:$0xff]
    %v50 = vld [vmem:[#allocation2] sm:$0xff]
    %v51 = vld [vmem:[#allocation2 + $0x8] sm:$0xff]
    %v52 = vstv %s47
    %v53 = vmul.f32 %v52, %v50
    %v54 = vmul.f32 %v52, %v51
    %v55 = vstv %s46
    %v56 = vmul.f32 %v55, %v48
    %v57 = vmul.f32 %v55, %v49
    %v58 = vadd.f32 %v53, %v56
    %v59 = vadd.f32 %v54, %v57
    %vm60 = vcmp.ge.f32.partialorder %v58, 1.0
    %vm61 = vcmp.ge.f32.partialorder %v59, 1.0
    %v62 = vsel %vm60, 0.0, %v58
    %v63 = vsel %vm61, 0.0, %v59
    %64 = vst [vmem:[#allocation2] sm:$0xff] %v62
    %65 = vst [vmem:[#allocation2 + $0x8] sm:$0xff] %v63
    %v66 = vsel %vm60, 1, 0
    %v67 = vsel %vm61, 1, 0
    %v68 = vcvt.s32.f32 %v66
    %v69 = vcvt.s32.f32 %v67
    %70 = vst [vmem:[#allocation8] sm:$0xff] %v68
    %71 = vst [vmem:[#allocation8 + $0x8] sm:$0xff] %v69
    %72 = vst [vmem:[#allocation9] sm:$0xff] %v62
    %73 = vst [vmem:[#allocation9 + $0x8] sm:$0xff] %v63
    %s74 = scalar_lea.vmem [#allocation7], 16
    %v75 = vld [vmem:[%s74] sm:$0xff]
    %v76 = vld [vmem:[%s74 + $0x8] sm:$0xff]
    %v77 = vld [vmem:[#allocation2] sm:$0xff]
    %v78 = vld [vmem:[#allocation2 + $0x8] sm:$0xff]
    %v79 = vmul.f32 %v52, %v77
    %v80 = vmul.f32 %v52, %v78
    %v81 = vmul.f32 %v55, %v75
    %v82 = vmul.f32 %v55, %v76
    %v83 = vadd.f32 %v79, %v81
    %v84 = vadd.f32 %v80, %v82
    %vm85 = vcmp.ge.f32.partialorder %v83, 1.0
    %vm86 = vcmp.ge.f32.partialorder %v84, 1.0
    %v87 = vsel %vm85, 0.0, %v83
    %v88 = vsel %vm86, 0.0, %v84
    %89 = vst [vmem:[#allocation2] sm:$0xff] %v87
    %90 = vst [vmem:[#allocation2 + $0x8] sm:$0xff] %v88
    %v91 = vsel %vm85, 1, 0
    %v92 = vsel %vm86, 1, 0
    %v93 = vcvt.s32.f32 %v91
    %v94 = vcvt.s32.f32 %v92
    %s95 = scalar_lea.vmem [#allocation8], 16
    %96 = vst [vmem:[%s95] sm:$0xff] %v93
    %97 = vst [vmem:[%s95 + $0x8] sm:$0xff] %v94
    %s98 = scalar_lea.vmem [#allocation9], 16
    %99 = vst [vmem:[%s98] sm:$0xff] %v87
    %100 = vst [vmem:[%s98 + $0x8] sm:$0xff] %v88
    %s101 = scalar_lea.vmem [#allocation7], 32
    %v102 = vld [vmem:[%s101] sm:$0xff]
    %v103 = vld [vmem:[%s101 + $0x8] sm:$0xff]
    %v104 = vld [vmem:[#allocation2] sm:$0xff]
    %v105 = vld [vmem:[#allocation2 + $0x8] sm:$0xff]
    %v106 = vmul.f32 %v52, %v104
    %v107 = vmul.f32 %v52, %v105
    %v108 = vmul.f32 %v55, %v102
    %v109 = vmul.f32 %v55, %v103
    %v110 = vadd.f32 %v106, %v108
    %v111 = vadd.f32 %v107, %v109
    %vm112 = vcmp.ge.f32.partialorder %v110, 1.0
    %vm113 = vcmp.ge.f32.partialorder %v111, 1.0
    %v114 = vsel %vm112, 0.0, %v110
    %v115 = vsel %vm113, 0.0, %v111
    %116 = vst [vmem:[#allocation2] sm:$0xff] %v114
    %117 = vst [vmem:[#allocation2 + $0x8] sm:$0xff] %v115
    %v118 = vsel %vm112, 1, 0
    %v119 = vsel %vm113, 1, 0
    %v120 = vcvt.s32.f32 %v118
    %v121 = vcvt.s32.f32 %v119
    %s122 = scalar_lea.vmem [#allocation8], 32
    %123 = vst [vmem:[%s122] sm:$0xff] %v120
    %124 = vst [vmem:[%s122 + $0x8] sm:$0xff] %v121
    %s125 = scalar_lea.vmem [#allocation9], 32
    %126 = vst [vmem:[%s125] sm:$0xff] %v114
    %127 = vst [vmem:[%s125 + $0x8] sm:$0xff] %v115
    %s128 = scalar_lea.vmem [#allocation7], 48
    %v129 = vld [vmem:[%s128] sm:$0xff]
    %v130 = vld [vmem:[%s128 + $0x8] sm:$0xff]
    %v131 = vld [vmem:[#allocation2] sm:$0xff]
    %v132 = vld [vmem:[#allocation2 + $0x8] sm:$0xff]
    %v133 = vmul.f32 %v52, %v131
    %v134 = vmul.f32 %v52, %v132
    %v135 = vmul.f32 %v55, %v129
    %v136 = vmul.f32 %v55, %v130
    %v137 = vadd.f32 %v133, %v135
    %v138 = vadd.f32 %v134, %v136
    %vm139 = vcmp.ge.f32.partialorder %v137, 1.0
    %vm140 = vcmp.ge.f32.partialorder %v138, 1.0
    %v141 = vsel %vm139, 0.0, %v137
    %v142 = vsel %vm140, 0.0, %v138
    %143 = vst [vmem:[#allocation2] sm:$0xff] %v141
    %144 = vst [vmem:[#allocation2 + $0x8] sm:$0xff] %v142
    %v145 = vsel %vm139, 1, 0
    %v146 = vsel %vm140, 1, 0
    %v147 = vcvt.s32.f32 %v145
    %v148 = vcvt.s32.f32 %v146
    %s149 = scalar_lea.vmem [#allocation8], 48
    %150 = vst [vmem:[%s149] sm:$0xff] %v147
    %151 = vst [vmem:[%s149 + $0x8] sm:$0xff] %v148
    %s152 = scalar_lea.vmem [#allocation9], 48
    %153 = vst [vmem:[%s152] sm:$0xff] %v141
    %154 = vst [vmem:[%s152 + $0x8] sm:$0xff] %v142
    %s155 = scalar_lea.vmem [#allocation7], 64
    %v156 = vld [vmem:[%s155] sm:$0xff]
    %v157 = vld [vmem:[%s155 + $0x8] sm:$0xff]
    %v158 = vld [vmem:[#allocation2] sm:$0xff]
    %v159 = vld [vmem:[#allocation2 + $0x8] sm:$0xff]
    %v160 = vmul.f32 %v52, %v158
    %v161 = vmul.f32 %v52, %v159
    %v162 = vmul.f32 %v55, %v156
    %v163 = vmul.f32 %v55, %v157
    %v164 = vadd.f32 %v160, %v162
    %v165 = vadd.f32 %v161, %v163
    %vm166 = vcmp.ge.f32.partialorder %v164, 1.0
    %vm167 = vcmp.ge.f32.partialorder %v165, 1.0
    %v168 = vsel %vm166, 0.0, %v164
    %v169 = vsel %vm167, 0.0, %v165
    %170 = vst [vmem:[#allocation2] sm:$0xff] %v168
    %171 = vst [vmem:[#allocation2 + $0x8] sm:$0xff] %v169
    %v172 = vsel %vm166, 1, 0
    %v173 = vsel %vm167, 1, 0
    %v174 = vcvt.s32.f32 %v172
    %v175 = vcvt.s32.f32 %v173
    %s176 = scalar_lea.vmem [#allocation8], 64
    %177 = vst [vmem:[%s176] sm:$0xff] %v174
    %178 = vst [vmem:[%s176 + $0x8] sm:$0xff] %v175
    %s179 = scalar_lea.vmem [#allocation9], 64
    %180 = vst [vmem:[%s179] sm:$0xff] %v168
    %181 = vst [vmem:[%s179 + $0x8] sm:$0xff] %v169
    %s182 = scalar_lea.vmem [#allocation7], 80
    %v183 = vld [vmem:[%s182] sm:$0xff]
    %v184 = vld [vmem:[%s182 + $0x8] sm:$0xff]
    %v185 = vld [vmem:[#allocation2] sm:$0xff]
    %v186 = vld [vmem:[#allocation2 + $0x8] sm:$0xff]
    %v187 = vmul.f32 %v52, %v185
    %v188 = vmul.f32 %v52, %v186
    %v189 = vmul.f32 %v55, %v183
    %v190 = vmul.f32 %v55, %v184
    %v191 = vadd.f32 %v187, %v189
    %v192 = vadd.f32 %v188, %v190
    %vm193 = vcmp.ge.f32.partialorder %v191, 1.0
    %vm194 = vcmp.ge.f32.partialorder %v192, 1.0
    %v195 = vsel %vm193, 0.0, %v191
    %v196 = vsel %vm194, 0.0, %v192
    %197 = vst [vmem:[#allocation2] sm:$0xff] %v195
    %198 = vst [vmem:[#allocation2 + $0x8] sm:$0xff] %v196
    %v199 = vsel %vm193, 1, 0
    %v200 = vsel %vm194, 1, 0
    %v201 = vcvt.s32.f32 %v199
    %v202 = vcvt.s32.f32 %v200
    %s203 = scalar_lea.vmem [#allocation8], 80
    %204 = vst [vmem:[%s203] sm:$0xff] %v201
    %205 = vst [vmem:[%s203 + $0x8] sm:$0xff] %v202
    %s206 = scalar_lea.vmem [#allocation9], 80
    %207 = vst [vmem:[%s206] sm:$0xff] %v195
    %208 = vst [vmem:[%s206 + $0x8] sm:$0xff] %v196
    %s209 = scalar_lea.vmem [#allocation7], 96
    %v210 = vld [vmem:[%s209] sm:$0xff]
    %v211 = vld [vmem:[%s209 + $0x8] sm:$0xff]
    %v212 = vld [vmem:[#allocation2] sm:$0xff]
    %v213 = vld [vmem:[#allocation2 + $0x8] sm:$0xff]
    %v214 = vmul.f32 %v52, %v212
    %v215 = vmul.f32 %v52, %v213
    %v216 = vmul.f32 %v55, %v210
    %v217 = vmul.f32 %v55, %v211
    %v218 = vadd.f32 %v214, %v216
    %v219 = vadd.f32 %v215, %v217
    %vm220 = vcmp.ge.f32.partialorder %v218, 1.0
    %vm221 = vcmp.ge.f32.partialorder %v219, 1.0
    %v222 = vsel %vm220, 0.0, %v218
    %v223 = vsel %vm221, 0.0, %v219
    %224 = vst [vmem:[#allocation2] sm:$0xff] %v222
    %225 = vst [vmem:[#allocation2 + $0x8] sm:$0xff] %v223
    %v226 = vsel %vm220, 1, 0
    %v227 = vsel %vm221, 1, 0
    %v228 = vcvt.s32.f32 %v226
    %v229 = vcvt.s32.f32 %v227
    %s230 = scalar_lea.vmem [#allocation8], 96
    %231 = vst [vmem:[%s230] sm:$0xff] %v228
    %232 = vst [vmem:[%s230 + $0x8] sm:$0xff] %v229
    %s233 = scalar_lea.vmem [#allocation9], 96
    %234 = vst [vmem:[%s233] sm:$0xff] %v222
    %235 = vst [vmem:[%s233 + $0x8] sm:$0xff] %v223
    %s236 = scalar_lea.vmem [#allocation7], 112
    %v237 = vld [vmem:[%s236] sm:$0xff]
    %v238 = vld [vmem:[%s236 + $0x8] sm:$0xff]
    %v239 = vld [vmem:[#allocation2] sm:$0xff]
    %v240 = vld [vmem:[#allocation2 + $0x8] sm:$0xff]
    %v241 = vmul.f32 %v52, %v239
    %v242 = vmul.f32 %v52, %v240
    %v243 = vmul.f32 %v55, %v237
    %v244 = vmul.f32 %v55, %v238
    %v245 = vadd.f32 %v241, %v243
    %v246 = vadd.f32 %v242, %v244
    %vm247 = vcmp.ge.f32.partialorder %v245, 1.0
    %vm248 = vcmp.ge.f32.partialorder %v246, 1.0
    %v249 = vsel %vm247, 0.0, %v245
    %v250 = vsel %vm248, 0.0, %v246
    %251 = vst [vmem:[#allocation2] sm:$0xff] %v249
    %252 = vst [vmem:[#allocation2 + $0x8] sm:$0xff] %v250
    %v253 = vsel %vm247, 1, 0
    %v254 = vsel %vm248, 1, 0
    %v255 = vcvt.s32.f32 %v253
    %v256 = vcvt.s32.f32 %v254
    %s257 = scalar_lea.vmem [#allocation8], 112
    %258 = vst [vmem:[%s257] sm:$0xff] %v255
    %259 = vst [vmem:[%s257 + $0x8] sm:$0xff] %v256
    %s260 = scalar_lea.vmem [#allocation9], 112
    %261 = vst [vmem:[%s260] sm:$0xff] %v249
    %262 = vst [vmem:[%s260 + $0x8] sm:$0xff] %v250
    // Predicated region
    $region22: #{tpu_custom_call.1} parent=1 // pred_check
      _
    $region23: #{tpu_custom_call.1} parent=1 // pred_check_branch
      %264 = sbr.rel (0) target = $region25
    $region24: #{tpu_custom_call.1} parent=1 // pred_region
      %s266 = ssub.s32 2048, 2048
      %267 = vsyncadd [#allocation5], %s266
      %s268 = sshll.u32 [#allocation8], 4
      %s269 = int_to_ptr.vmem [resolvable:$true] %s268
      %274 = dma.vmem_to_hbm [thread:$0]  %s269, 2048, %s2, [#allocation5], 256, 256, 16
    $region25: #{tpu_custom_call.1} parent=1 // pred_fallthru
      _
    // Predicated region
    $region26: #{tpu_custom_call.1} parent=1 // pred_check
      _
    $region27: #{tpu_custom_call.1} parent=1 // pred_check_branch
      %276 = sbr.rel (0) target = $region29
    $region28: #{tpu_custom_call.1} parent=1 // pred_region
      %s278 = ssub.s32 2048, 2048
      %279 = vsyncadd [#allocation10], %s278
      %s280 = sshll.u32 [#allocation9], 4
      %s281 = int_to_ptr.vmem [resolvable:$true] %s280
      %286 = dma.vmem_to_hbm [thread:$0]  %s281, 2048, %s3, [#allocation10], 256, 256, 16
    $region29: #{tpu_custom_call.1} parent=1 // pred_fallthru
      _
    // Predicated region
    $region30: #{tpu_custom_call.1} parent=1 // pred_check
      _
    $region31: #{tpu_custom_call.1} parent=1 // pred_check_branch
      %288 = sbr.rel (0) target = $region33
    $region32: #{tpu_custom_call.1} parent=1 // pred_region
      %289 = dma.done [#allocation5], 2048
    $region33: #{tpu_custom_call.1} parent=1 // pred_fallthru
      _
    // Predicated region
    $region34: #{tpu_custom_call.1} parent=1 // pred_check
      _
    $region35: #{tpu_custom_call.1} parent=1 // pred_check_branch
      %291 = sbr.rel (0) target = $region37
    $region36: #{tpu_custom_call.1} parent=1 // pred_region
      %292 = dma.done [#allocation10], 2048
    $region37: #{tpu_custom_call.1} parent=1 // pred_fallthru
      _
    %293 = vsyncpa [#allocation4], 1
    %294 = vsyncpa [#allocation5], 1
    %295 = vsyncpa [#allocation10], 1
    %296 = vsyncpa [#allocation6], 1

</llo_original>
